<compile_context>
chip_gen: v7x
topology: tpu7x:2x2x1
jax: 0.10.0
libtpu: 0.0.40
codegen_flags: <defaults>
</compile_context>

<pallas_src>
import functools
import math

import jax
import jax.numpy as jnp
from jax.experimental import pallas as pl
from jax.experimental.pallas import tpu as pltpu


def _round_up(x, m):
    return ((x + m - 1) // m) * m


def _pad_axis(x, target, axis):
    pad = target - x.shape[axis]
    if pad <= 0:
        return x
    widths = [(0, 0)] * x.ndim
    widths[axis] = (0, pad)
    return jnp.pad(x, widths)


def _vmem_capacity_bytes():
    # Generation-aware VMEM capacity (128 MiB v5e/v6e, 64 MiB per-TC v7x).
    try:
        return int(pltpu.get_tpu_info().vmem_capacity_bytes)
    except Exception:
        return 64 << 20  # conservative fallback


def _plan_tiling(m, d_pad, r_pad, op_bytes, out_bytes, tm_req, sub, vmem_budget):
    """Returns (tm, tr, tile_r). tile_r=False => E^T fully VMEM-resident."""
    m_cap = _round_up(max(m, sub), sub)
    fixed = d_pad * d_pad * op_bytes + d_pad * 4          # W^T + bias (Buffered(1))

    # Path 1: resident E^T (single buffered), 1-D grid over M.
    e_res = d_pad * r_pad * op_bytes + r_pad * 4
    per_m = (2 * d_pad * op_bytes            # streamed x (double buffered)
             + 2 * r_pad * out_bytes         # streamed out (double buffered)
             + d_pad * 4 + 2 * r_pad * 4)    # f32 proj / cross / d2 temporaries
    avail = vmem_budget - fixed - e_res
    if avail >= sub * per_m:
        tm_fit = (avail // per_m) // sub * sub
        tm = max(min(_round_up(tm_req, sub), m_cap, tm_fit), sub)
        return tm, r_pad, False

    # Path 2: stream E^T over an inner R grid axis (proj cached in scratch).
    tm = max(min(_round_up(tm_req, sub), m_cap, 256), sub)
    base_m = (2 * d_pad * op_bytes + d_pad * 4    # streamed x + f32 proj temp
              + d_pad * op_bytes + 4)             # proj / p_sq scratch
    per_tr = (2 * (d_pad * op_bytes + 4)          # E^T + ||e||^2 (double buffered)
              + tm * (2 * out_bytes + 2 * 4))     # streamed out + cross/d2 temps
    avail = vmem_budget - fixed - tm * base_m
    tr = max((avail // max(per_tr, 1)) // 128 * 128, 128)
    tr = min(tr, r_pad)
    return tm, tr, True


def _kernel_resident(scale_ref, x_ref, wt_ref, b_ref, et_ref, esq_ref, out_ref):
    neg_scale = scale_ref[0]  # precomputed -clamp(exp(logit_scale), 100)

    # projection: x @ W^T + b  (MXU, f32 accumulate)
    proj = jnp.dot(x_ref[...], wt_ref[...],
                   preferred_element_type=jnp.float32) + b_ref[...]
    proj_op = proj.astype(et_ref.dtype)
    proj_f32 = proj_op.astype(jnp.float32)

    # ||p||^2 from the same (possibly bf16-rounded) values used in the cross dot
    p_sq = jnp.sum(proj_f32 * proj_f32, axis=-1, keepdims=True)     # (TM, 1)

    # cross = p . (-2 e)   (the -2 is folded into E^T in the wrapper)
    cross = jnp.dot(proj_op, et_ref[...],
                    preferred_element_type=jnp.float32)             # (TM, Rp)

    d2 = jnp.maximum(p_sq + esq_ref[...] + cross, 0.0)
    out_ref[...] = (jnp.sqrt(d2) * neg_scale).astype(out_ref.dtype)


def _kernel_rtiled(scale_ref, x_ref, wt_ref, b_ref, et_ref, esq_ref, out_ref,
                   proj_ref, psq_ref):
    # Compute projection only on the first R block of each M tile; cache it.
    @pl.when(pl.program_id(1) == 0)
    def _():
        proj = jnp.dot(x_ref[...], wt_ref[...],
                       preferred_element_type=jnp.float32) + b_ref[...]
        proj_op = proj.astype(proj_ref.dtype)
        proj_ref[...] = proj_op
        proj_f32 = proj_op.astype(jnp.float32)
        psq_ref[...] = jnp.sum(proj_f32 * proj_f32, axis=-1, keepdims=True)

    cross = jnp.dot(proj_ref[...], et_ref[...],
                    preferred_element_type=jnp.float32)             # (TM, TR)
    d2 = jnp.maximum(psq_ref[...] + esq_ref[...] + cross, 0.0)
    out_ref[...] = (jnp.sqrt(d2) * scale_ref[0]).astype(out_ref.dtype)


@functools.partial(
    jax.jit, static_argnames=("tm", "r_block", "operand_dtype", "out_dtype"))
def embedding_classifier(features, w, b, embeddings, logit_scale, *, tm=512,
                         r_block=None, operand_dtype=jnp.bfloat16,
                         out_dtype=None):
    """features: (B, N, D); w: (D, D) nn.Linear weight; b: (D,);
    embeddings: (R, D); logit_scale: scalar. Returns logits (B, N, R).

    operand_dtype=bfloat16 (default) uses the bf16 MXU path with f32
    accumulation; pass jnp.float32 for exact math. r_block forces the
    R-tiled (streamed E^T) path with that block size."""
    B, N, D = features.shape
    R = embeddings.shape[0]
    M = B * N
    out_dt = jnp.dtype(out_dtype) if out_dtype is not None else features.dtype
    op_dt = (jnp.dtype(operand_dtype) if operand_dtype is not None
             else jnp.dtype(features.dtype))
    op_bytes = op_dt.itemsize
    out_bytes = jnp.dtype(out_dt).itemsize

    d_pad = _round_up(D, 128)
    r_pad = _round_up(R, 128)
    sub = 16 if op_bytes < 4 else 8     # bf16 (16,128) sublane packing

    vmem_cap = _vmem_capacity_bytes()
    vmem_budget = int(0.85 * vmem_cap)

    if r_block is not None:
        tr = _round_up(min(int(r_block), r_pad), 128)
        tile_r = True
        tm_ = max(min(_round_up(tm, sub), _round_up(M, sub)), sub)
    else:
        tm_, tr, tile_r = _plan_tiling(M, d_pad, r_pad, op_bytes, out_bytes,
                                       tm, sub, vmem_budget)

    r_pad = _round_up(r_pad, tr)
    m_pad = _round_up(max(M, tm_), tm_)
    m_tiles = m_pad // tm_
    r_tiles = r_pad // tr

    # --- operand prep (all padding exact: zero cols/rows contribute nothing) ---
    x2d = _pad_axis(_pad_axis(features.reshape(M, D), m_pad, 0),
                    d_pad, 1).astype(op_dt)
    wt = _pad_axis(_pad_axis(w.T, d_pad, 0), d_pad, 1).astype(op_dt)
    b2d = _pad_axis(b.reshape(1, D).astype(jnp.float32), d_pad, 1)
    # -2 folded into E^T (x2 is exact in fp, so still consistent with e_sq)
    e_t = _pad_axis(_pad_axis((-2.0 * embeddings).T, d_pad, 0),
                    r_pad, 1).astype(op_dt)
    # ||e||^2 from the op-dtype-rounded embeddings (matches the cross term)
    e_rounded = embeddings.astype(op_dt).astype(jnp.float32)
    e_sq = _pad_axis(
        jnp.sum(e_rounded * e_rounded, axis=-1, keepdims=True).T, r_pad, 1)
    # -clamp(exp(logit_scale), 100) precomputed once (keeps EUP out of the loop)
    neg_scale = (-jnp.minimum(jnp.exp(jnp.asarray(logit_scale, jnp.float32)),
                              100.0)).reshape(1)

    # --- VMEM accounting (includes f32 intermediates + scratch) ---
    need = (d_pad * d_pad * op_bytes + d_pad * 4                         # W^T + bias
            + (2 if tile_r else 1) * (d_pad * tr * op_bytes + tr * 4)    # E^T + ||e||^2
            + 2 * tm_ * d_pad * op_bytes + 2 * tm_ * tr * out_bytes      # x / out streams
            + tm_ * d_pad * 4 + 2 * tm_ * tr * 4)                        # f32 temporaries
    if tile_r:
        need += tm_ * d_pad * op_bytes + tm_ * 4                         # proj/p_sq scratch
    vmem_limit = int(min(max(need + (4 << 20), 32 << 20), int(0.9 * vmem_cap)))

    cost = pl.CostEstimate(
        flops=2 * m_pad * d_pad * d_pad + 2 * m_pad * d_pad * r_pad
        + 6 * m_pad * r_pad,
        transcendentals=m_pad * r_pad,
        bytes_accessed=(m_pad * d_pad + d_pad * d_pad
                        + d_pad * r_pad * (m_tiles if tile_r else 1)) * op_bytes
        + m_pad * r_pad * out_bytes + 4 * (d_pad + r_pad + 1),
    )

    if not tile_r:
        grid = (m_tiles,)
        in_specs = [
            pl.BlockSpec(memory_space=pltpu.MemorySpace.SMEM),            # -scale
            pl.BlockSpec((tm_, d_pad), lambda i: (i, 0)),                 # x (streamed)
            pl.BlockSpec((d_pad, d_pad), lambda i: (0, 0),
                         pipeline_mode=pl.Buffered(1)),                   # W^T
            pl.BlockSpec((1, d_pad), lambda i: (0, 0),
                         pipeline_mode=pl.Buffered(1)),                   # bias
            pl.BlockSpec((d_pad, r_pad), lambda i: (0, 0),
                         pipeline_mode=pl.Buffered(1)),                   # -2 E^T
            pl.BlockSpec((1, r_pad), lambda i: (0, 0),
                         pipeline_mode=pl.Buffered(1)),                   # ||e||^2
        ]
        out_specs = pl.BlockSpec((tm_, r_pad), lambda i: (i, 0))
        scratch = []
        kernel = _kernel_resident
        dims = ("parallel",)
    else:
        grid = (m_tiles, r_tiles)
        in_specs = [
            pl.BlockSpec(memory_space=pltpu.MemorySpace.SMEM),            # -scale
            pl.BlockSpec((tm_, d_pad), lambda i, r: (i, 0)),              # x
            pl.BlockSpec((d_pad, d_pad), lambda i, r: (0, 0),
                         pipeline_mode=pl.Buffered(1)),                   # W^T
            pl.BlockSpec((1, d_pad), lambda i, r: (0, 0),
                         pipeline_mode=pl.Buffered(1)),                   # bias
            pl.BlockSpec((d_pad, tr), lambda i, r: (0, r)),               # -2 E^T block
            pl.BlockSpec((1, tr), lambda i, r: (0, r)),                   # ||e||^2 block
        ]
        out_specs = pl.BlockSpec((tm_, tr), lambda i, r: (i, r))
        scratch = [pltpu.VMEM((tm_, d_pad), op_dt),                       # cached proj
                   pltpu.VMEM((tm_, 1), jnp.float32)]                     # cached ||p||^2
        kernel = _kernel_rtiled
        dims = ("parallel", "arbitrary")

    out = pl.pallas_call(
        kernel,
        out_shape=jax.ShapeDtypeStruct((m_pad, r_pad), out_dt),
        grid=grid,
        in_specs=in_specs,
        out_specs=out_specs,
        scratch_shapes=scratch,
        compiler_params=pltpu.CompilerParams(
            dimension_semantics=dims,
            vmem_limit_bytes=vmem_limit,
        ),
        cost_estimate=cost,
    )(neg_scale, x2d, wt, b2d, e_t, e_sq)

    return out[:M, :R].reshape(B, N, R)


def _reference(features, w, b, embeddings, logit_scale):
    proj = jnp.einsum('bnd,ed->bne', features, w) + b
    diff = proj[:, :, None, :] - embeddings[None, None, :, :]
    dists = jnp.sqrt(jnp.sum(diff * diff, axis=-1))
    scale = jnp.minimum(jnp.exp(logit_scale), 100.0)
    return -dists * scale


def _init_params(key, in_features, out_features):
    kw, kb, ke = jax.random.split(key, 3)
    # nn.Linear default init: kaiming_uniform(a=sqrt(5)) -> U(-1/sqrt(fan_in), ...)
    bound = 1.0 / math.sqrt(in_features)
    w = jax.random.uniform(kw, (in_features, in_features), jnp.float32, -bound, bound)
    b = jax.random.uniform(kb, (in_features,), jnp.float32, -bound, bound)
    e = jax.random.uniform(ke, (out_features, in_features), jnp.float32, -bound, bound)
    logit_scale = jnp.log(jnp.asarray(1.0, jnp.float32))
    return w, b, e, logit_scale


if __name__ == "__main__":
    B, N, D = 2, 16, 32
    key = jax.random.PRNGKey(0)
    kx, kp1, kp2 = jax.random.split(key, 3)
    features = jax.random.normal(kx, (B, N, D), jnp.float32)

    # 1) f32 operands, resident-E^T path (R <= 128); tm=16 keeps 2 grid steps alive
    R1 = 20
    w, b, emb, logit_scale = _init_params(kp1, D, R1)
    logits = embedding_classifier(features, w, b, emb, logit_scale, tm=16,
                                  operand_dtype=jnp.float32)
    logits = jax.block_until_ready(logits)
    ref = _reference(features, w, b, emb, logit_scale)
    assert logits.shape == (B, N, R1)
    assert jnp.allclose(logits, ref, atol=1e-4, rtol=1e-4), "f32 resident path mismatch"

    # 2) f32 operands, forced R-tiled path (streams E^T blocks, proj cached in scratch)
    R2 = 200
    w2, b2, emb2, ls2 = _init_params(kp2, D, R2)
    logits2 = embedding_classifier(features, w2, b2, emb2, ls2, tm=16,
                                   r_block=128, operand_dtype=jnp.float32)
    logits2 = jax.block_until_ready(logits2)
    ref2 = _reference(features, w2, b2, emb2, ls2)
    assert logits2.shape == (B, N, R2)
    assert jnp.allclose(logits2, ref2, atol=1e-4, rtol=1e-4), "f32 R-tiled path mismatch"

    # 3) default bf16 operand path (f32 accumulation) — loose tolerance check
    logits3 = embedding_classifier(features, w, b, emb, logit_scale, tm=16)
    logits3 = jax.block_until_ready(logits3)
    assert logits3.shape == (B, N, R1)
    assert bool(jnp.isfinite(logits3).all())
    assert jnp.allclose(logits3, ref, atol=0.5, rtol=0.1), "bf16 path out of tolerance"

    print("KERNEL_OK")
</pallas_src>

<mosaic_0001>
module attributes {stable_mosaic.version = 11 : i64} {
  func.func @_kernel_resident(%arg0: i32, %arg1: memref<1xf32, #tpu.memory_space<smem>>, %arg2: memref<16x128xf32, #tpu.memory_space<vmem>>, %arg3: memref<128x128xf32, #tpu.memory_space<vmem>>, %arg4: memref<1x128xf32, #tpu.memory_space<vmem>>, %arg5: memref<128x128xf32, #tpu.memory_space<vmem>>, %arg6: memref<1x128xf32, #tpu.memory_space<vmem>>, %arg7: memref<16x128xf32, #tpu.memory_space<vmem>>) attributes {dimension_semantics = [#tpu.dimension_semantics<parallel>], iteration_bounds = array<i64: 2>, scalar_prefetch = 0 : i64, scratch_operands = 0 : i64, tpu.core_type = #tpu.core_type<tc>, window_params = [{transform_indices = @transform_0, window_bounds = array<i64: 1>}, {transform_indices = @transform_1, window_bounds = array<i64: 16, 128>}, {pipeline_mode = #tpu.pipeline_mode<synchronous>, transform_indices = @transform_2, window_bounds = array<i64: 128, 128>}, {pipeline_mode = #tpu.pipeline_mode<synchronous>, transform_indices = @transform_3, window_bounds = array<i64: 1, 128>}, {pipeline_mode = #tpu.pipeline_mode<synchronous>, transform_indices = @transform_4, window_bounds = array<i64: 128, 128>}, {pipeline_mode = #tpu.pipeline_mode<synchronous>, transform_indices = @transform_5, window_bounds = array<i64: 1, 128>}, {transform_indices = @transform_6, window_bounds = array<i64: 16, 128>}]} {
    %c0 = arith.constant 0 : index
    %0 = memref.load %arg1[%c0] : memref<1xf32, #tpu.memory_space<smem>>
    %c0_0 = arith.constant 0 : index
    %c0_1 = arith.constant 0 : index
    %1 = vector.load %arg2[%c0_0, %c0_1] : memref<16x128xf32, #tpu.memory_space<vmem>>, vector<16x128xf32>
    %c0_2 = arith.constant 0 : index
    %c0_3 = arith.constant 0 : index
    %2 = vector.load %arg3[%c0_2, %c0_3] : memref<128x128xf32, #tpu.memory_space<vmem>>, vector<128x128xf32>
    %cst = arith.constant dense<0.000000e+00> : vector<16x128xf32>
    %3 = tpu.matmul %1, %2, %cst {dimension_numbers = #tpu.dot_dimension_numbers<[1], [0], [0], [1], [0, 0, 1, 1], [], []>} : vector<16x128xf32>, vector<128x128xf32>, vector<16x128xf32> -> vector<16x128xf32>
    %c0_4 = arith.constant 0 : index
    %c0_5 = arith.constant 0 : index
    %4 = vector.load %arg4[%c0_4, %c0_5] : memref<1x128xf32, #tpu.memory_space<vmem>>, vector<1x128xf32>
    %5 = vector.broadcast %4 : vector<1x128xf32> to vector<16x128xf32>
    %6 = arith.addf %3, %5 : vector<16x128xf32>
    %7 = arith.mulf %6, %6 : vector<16x128xf32>
    %cst_6 = arith.constant dense<0.000000e+00> : vector<16xf32>
    %8 = vector.multi_reduction <add>, %7, %cst_6 [1] : vector<16x128xf32> to vector<16xf32>
    %9 = vector.shape_cast %8 : vector<16xf32> to vector<16x1xf32>
    %c0_7 = arith.constant 0 : index
    %c0_8 = arith.constant 0 : index
    %10 = vector.load %arg5[%c0_7, %c0_8] : memref<128x128xf32, #tpu.memory_space<vmem>>, vector<128x128xf32>
    %cst_9 = arith.constant dense<0.000000e+00> : vector<16x128xf32>
    %11 = tpu.matmul %6, %10, %cst_9 {dimension_numbers = #tpu.dot_dimension_numbers<[1], [0], [0], [1], [0, 0, 1, 1], [], []>} : vector<16x128xf32>, vector<128x128xf32>, vector<16x128xf32> -> vector<16x128xf32>
    %c0_10 = arith.constant 0 : index
    %c0_11 = arith.constant 0 : index
    %12 = vector.load %arg6[%c0_10, %c0_11] : memref<1x128xf32, #tpu.memory_space<vmem>>, vector<1x128xf32>
    %13 = vector.broadcast %9 : vector<16x1xf32> to vector<16x128xf32>
    %14 = vector.broadcast %12 : vector<1x128xf32> to vector<16x128xf32>
    %15 = arith.addf %13, %14 : vector<16x128xf32>
    %16 = arith.addf %15, %11 : vector<16x128xf32>
    %cst_12 = arith.constant 0.000000e+00 : f32
    %17 = vector.broadcast %cst_12 : f32 to vector<16x128xf32>
    %18 = arith.maximumf %16, %17 : vector<16x128xf32>
    %19 = math.sqrt %18 : vector<16x128xf32>
    %20 = vector.broadcast %0 : f32 to vector<16x128xf32>
    %21 = arith.mulf %19, %20 : vector<16x128xf32>
    %c0_13 = arith.constant 0 : index
    %c0_14 = arith.constant 0 : index
    %22 = vector.load %arg7[%c0_13, %c0_14] : memref<16x128xf32, #tpu.memory_space<vmem>>, vector<16x128xf32>
    tpu.vector_store %arg7[%c0_13, %c0_14], %21 {strides = array<i32>} : memref<16x128xf32, #tpu.memory_space<vmem>>, vector<16x128xf32>,
    return
  }
  func.func @transform_0(%arg0: i32) -> i32 {
    %c0_i32 = arith.constant 0 : i32
    %c0_i32_0 = arith.constant 0 : i32
    return %c0_i32 : i32
  }
  func.func @transform_1(%arg0: i32) -> (i32, i32) {
    %c0_i32 = arith.constant 0 : i32
    %c0_i32_0 = arith.constant 0 : i32
    return %arg0, %c0_i32 : i32, i32
  }
  func.func @transform_2(%arg0: i32) -> (i32, i32) {
    %c0_i32 = arith.constant 0 : i32
    %c0_i32_0 = arith.constant 0 : i32
    %c0_i32_1 = arith.constant 0 : i32
    return %c0_i32, %c0_i32_0 : i32, i32
  }
  func.func @transform_3(%arg0: i32) -> (i32, i32) {
    %c0_i32 = arith.constant 0 : i32
    %c0_i32_0 = arith.constant 0 : i32
    %c0_i32_1 = arith.constant 0 : i32
    return %c0_i32, %c0_i32_0 : i32, i32
  }
  func.func @transform_4(%arg0: i32) -> (i32, i32) {
    %c0_i32 = arith.constant 0 : i32
    %c0_i32_0 = arith.constant 0 : i32
    %c0_i32_1 = arith.constant 0 : i32
    return %c0_i32, %c0_i32_0 : i32, i32
  }
  func.func @transform_5(%arg0: i32) -> (i32, i32) {
    %c0_i32 = arith.constant 0 : i32
    %c0_i32_0 = arith.constant 0 : i32
    %c0_i32_1 = arith.constant 0 : i32
    return %c0_i32, %c0_i32_0 : i32, i32
  }
  func.func @transform_6(%arg0: i32) -> (i32, i32) {
    %c0_i32 = arith.constant 0 : i32
    %c0_i32_0 = arith.constant 0 : i32
    return %arg0, %c0_i32 : i32, i32
  }
}

</mosaic_0001>

<llo_original>
// kernel: embedding_classifier.1
$region0: #{embedding_classifier.1}
  #allocation0 [shape = 'u32[]', space=smem, size = 0x4, offset = 0x4, fixed_abs, tag = 'smem constant byte address 0x4 - core index']
  #allocation1 [shape = 'u32[144,128]{1,0:T(1,128)}', space=vmem, size = 0x12000, scoped, tag = 'internal scratch']
  #allocation2 [shape = 'f32[1]{0:T(128)S(6)}', space=smem, size = 0x200, scoped, tag = 'scoped memory for embedding_classifier.1']
  %s0 = inlined_call_operand.<no memory space> [shape: f32[1], index: 0, kind: input, shape index: {}]
  %s1 = inlined_call_operand.vmem [shape: f32[32,128], index: 1, kind: input, shape index: {}]
  %s2 = inlined_call_operand.vmem [shape: f32[128,128], index: 2, kind: input, shape index: {}]
  %s3 = inlined_call_operand.vmem [shape: f32[1,128], index: 3, kind: input, shape index: {}]
  %s4 = inlined_call_operand.vmem [shape: f32[128,128], index: 4, kind: input, shape index: {}]
  %s5 = inlined_call_operand.vmem [shape: f32[1,128], index: 5, kind: input, shape index: {}]
  %s6 = inlined_call_operand.hbm [shape: f32[32,128], index: 6, kind: output, shape index: {}]
  %s7 = sld [smem:[#allocation0]]
  $region57: #{embedding_classifier.1} parent=0
    _
  %s9 = ssub.s32 1, %s7
  %s10 = scalar_select 0, %s9, %s7
  %11 = sst [smem:[#allocation2]] %s0
  $region1: #{embedding_classifier.1} parent=0
    #allocation3 [shape = 'u8[16384]{0}', space=vmem, size = 0x4000, scoped, tag = 'output window, operand 0']
    #allocation4 [shape = 's32[2]{0}', space=sflag, size = 0x8, scoped, tag = 'scoped memory for embedding_classifier.1']
    %12 = vsyncpa [#allocation4], 0
    %s13 = scalar_lea.sflag [#allocation4], 1
    %14 = vsyncpa %s13, 0
    loop: start=0, step=1, limit=4
    $region2: #{embedding_classifier.1} parent=1 // loop_pre_header
      _
    $region3: #{embedding_classifier.1} parent=1 // loop_header
      %s16 = sphi 0, %s20
      %p17 = scmp.ge.s32.totalorder %s16, 4
      %s24 = sphi 0, %s24
      %s26 = sphi 0, %s24
      %s27 = sphi 0, %s26
      %s41 = sphi 0, %s27
      %s47 = sphi 0, %s49
      %s50 = sphi 0, %s47
      %s51 = sphi 0, %s50
      %s67 = sphi 0, %s51
      %s71 = sphi 0, %s71
      %s73 = sphi 0, %s71
      %s74 = sphi 0, %s73
      %s88 = sphi 0, %s74
      %s92 = sphi 0, %s92
      %s94 = sphi 0, %s92
      %s95 = sphi 0, %s94
      %s109 = sphi 0, %s95
      %s113 = sphi 0, %s113
      %s115 = sphi 0, %s113
      %s116 = sphi 0, %s115
      %s130 = sphi 0, %s116
      %s134 = sphi 0, %s134
      %s136 = sphi 0, %s134
      %s137 = sphi 0, %s136
      %s151 = sphi 0, %s137
      %s157 = sphi 0, %s159
      %s160 = sphi 0, %s157
      %s161 = sphi 0, %s160
      %s177 = sphi 0, %s161
    $region4: #{embedding_classifier.1} parent=1 // loop_header_branch
      %19 = sbr.rel (%p17) target = $region8
    $region5: #{embedding_classifier.1} parent=1 // loop_body
      %s21 = ssub.s32 %s16, 1
      %s22 = ssub.s32 %s16, 2
      %s23 = sadd.s32 %s16, 1
      %s25 = sadd.s32 %s24, 1
      %p28 = scmp.eq.s32.totalorder %s16, 1
      %p29 = scmp.ne.s32.totalorder %s24, %s26
      %p30 = scmp.eq.s32.totalorder %s16, 0
      %p31 = por %p29, %p30
      %p32 = scmp.ne.s32.totalorder %s24, %s26
      %p33 = scmp.eq.s32.totalorder %s21, 1
      %p34 = por %p32, %p33
      %p35 = scmp.ne.s32.totalorder %s26, %s27
      %p36 = scmp.eq.s32.totalorder %s21, 0
      %p37 = por %p35, %p36
      %p38 = scmp.ne.s32.totalorder %s26, %s27
      %p39 = scmp.eq.s32.totalorder %s22, 1
      %p40 = por %p38, %p39
      %p42 = scmp.ne.s32.totalorder %s27, %s41
      %p43 = scmp.eq.s32.totalorder %s22, 0
      %p44 = por %p42, %p43
      %s45 = ssub.s32 %s16, %s23
      %p46 = scmp.eq.s32.totalorder %s45, 0
      %s48 = sadd.s32 %s47, 1
      %s49 = scalar_select %p46, %s47, %s48
      %p52 = pneg %p46
      %p53 = scmp.eq.s32.totalorder %s16, 1
      %p54 = por %p52, %p53
      %p55 = scmp.ne.s32.totalorder %s47, %s50
      %p56 = scmp.eq.s32.totalorder %s16, 0
      %p57 = por %p55, %p56
      %p58 = scmp.ne.s32.totalorder %s47, %s50
      %p59 = scmp.eq.s32.totalorder %s21, 1
      %p60 = por %p58, %p59
      %p61 = scmp.ne.s32.totalorder %s50, %s51
      %p62 = scmp.eq.s32.totalorder %s21, 0
      %p63 = por %p61, %p62
      %p64 = scmp.ne.s32.totalorder %s50, %s51
      %p65 = scmp.eq.s32.totalorder %s22, 1
      %p66 = por %p64, %p65
      %p68 = scmp.ne.s32.totalorder %s51, %s67
      %p69 = scmp.eq.s32.totalorder %s22, 0
      %p70 = por %p68, %p69
      %s72 = sadd.s32 %s71, 1
      %p75 = scmp.eq.s32.totalorder %s16, 1
      %p76 = scmp.ne.s32.totalorder %s71, %s73
      %p77 = scmp.eq.s32.totalorder %s16, 0
      %p78 = por %p76, %p77
      %p79 = scmp.ne.s32.totalorder %s71, %s73
      %p80 = scmp.eq.s32.totalorder %s21, 1
      %p81 = por %p79, %p80
      %p82 = scmp.ne.s32.totalorder %s73, %s74
      %p83 = scmp.eq.s32.totalorder %s21, 0
      %p84 = por %p82, %p83
      %p85 = scmp.ne.s32.totalorder %s73, %s74
      %p86 = scmp.eq.s32.totalorder %s22, 1
      %p87 = por %p85, %p86
      %p89 = scmp.ne.s32.totalorder %s74, %s88
      %p90 = scmp.eq.s32.totalorder %s22, 0
      %p91 = por %p89, %p90
      %s93 = sadd.s32 %s92, 1
      %p96 = scmp.eq.s32.totalorder %s16, 1
      %p97 = scmp.ne.s32.totalorder %s92, %s94
      %p98 = scmp.eq.s32.totalorder %s16, 0
      %p99 = por %p97, %p98
      %p100 = scmp.ne.s32.totalorder %s92, %s94
      %p101 = scmp.eq.s32.totalorder %s21, 1
      %p102 = por %p100, %p101
      %p103 = scmp.ne.s32.totalorder %s94, %s95
      %p104 = scmp.eq.s32.totalorder %s21, 0
      %p105 = por %p103, %p104
      %p106 = scmp.ne.s32.totalorder %s94, %s95
      %p107 = scmp.eq.s32.totalorder %s22, 1
      %p108 = por %p106, %p107
      %p110 = scmp.ne.s32.totalorder %s95, %s109
      %p111 = scmp.eq.s32.totalorder %s22, 0
      %p112 = por %p110, %p111
      %s114 = sadd.s32 %s113, 1
      %p117 = scmp.eq.s32.totalorder %s16, 1
      %p118 = scmp.ne.s32.totalorder %s113, %s115
      %p119 = scmp.eq.s32.totalorder %s16, 0
      %p120 = por %p118, %p119
      %p121 = scmp.ne.s32.totalorder %s113, %s115
      %p122 = scmp.eq.s32.totalorder %s21, 1
      %p123 = por %p121, %p122
      %p124 = scmp.ne.s32.totalorder %s115, %s116
      %p125 = scmp.eq.s32.totalorder %s21, 0
      %p126 = por %p124, %p125
      %p127 = scmp.ne.s32.totalorder %s115, %s116
      %p128 = scmp.eq.s32.totalorder %s22, 1
      %p129 = por %p127, %p128
      %p131 = scmp.ne.s32.totalorder %s116, %s130
      %p132 = scmp.eq.s32.totalorder %s22, 0
      %p133 = por %p131, %p132
      %s135 = sadd.s32 %s134, 1
      %p138 = scmp.eq.s32.totalorder %s16, 1
      %p139 = scmp.ne.s32.totalorder %s134, %s136
      %p140 = scmp.eq.s32.totalorder %s16, 0
      %p141 = por %p139, %p140
      %p142 = scmp.ne.s32.totalorder %s134, %s136
      %p143 = scmp.eq.s32.totalorder %s21, 1
      %p144 = por %p142, %p143
      %p145 = scmp.ne.s32.totalorder %s136, %s137
      %p146 = scmp.eq.s32.totalorder %s21, 0
      %p147 = por %p145, %p146
      %p148 = scmp.ne.s32.totalorder %s136, %s137
      %p149 = scmp.eq.s32.totalorder %s22, 1
      %p150 = por %p148, %p149
      %p152 = scmp.ne.s32.totalorder %s137, %s151
      %p153 = scmp.eq.s32.totalorder %s22, 0
      %p154 = por %p152, %p153
      %s155 = ssub.s32 %s16, %s23
      %p156 = scmp.eq.s32.totalorder %s155, 0
      %s158 = sadd.s32 %s157, 1
      %s159 = scalar_select %p156, %s157, %s158
      %p162 = pneg %p156
      %p163 = scmp.eq.s32.totalorder %s16, 1
      %p164 = por %p162, %p163
      %p165 = scmp.ne.s32.totalorder %s157, %s160
      %p166 = scmp.eq.s32.totalorder %s16, 0
      %p167 = por %p165, %p166
      %p168 = scmp.ne.s32.totalorder %s157, %s160
      %p169 = scmp.eq.s32.totalorder %s21, 1
      %p170 = por %p168, %p169
      %p171 = scmp.ne.s32.totalorder %s160, %s161
      %p172 = scmp.eq.s32.totalorder %s21, 0
      %p173 = por %p171, %p172
      %p174 = scmp.ne.s32.totalorder %s160, %s161
      %p175 = scmp.eq.s32.totalorder %s22, 1
      %p176 = por %p174, %p175
      %p178 = scmp.ne.s32.totalorder %s161, %s177
      %p179 = scmp.eq.s32.totalorder %s22, 0
      %p180 = por %p178, %p179
      %p181 = scmp.le.s32.totalorder 1, %s16
      %p182 = scmp.lt.s32.totalorder %s16, 3
      %p183 = pnand %p181, %p182
      %p184 = pneg %p183
      // Predicated region
      $region9: #{embedding_classifier.1} parent=5 // pred_check
        _
      $region10: #{embedding_classifier.1} parent=5 // pred_check_branch
        %186 = sbr.rel (%p183) target = $region12
      $region11: #{embedding_classifier.1} parent=5 // pred_region
        %s187 = ssub.s32 %s16, 1
        // Predicated region
        $region13: #{embedding_classifier.1} parent=11 // pred_check
          %p188 = pneg %p37
        $region14: #{embedding_classifier.1} parent=11 // pred_check_branch
          %190 = sbr.rel (%p188) target = $region16
        $region15: #{embedding_classifier.1} parent=11 // pred_region
          _
        $region16: #{embedding_classifier.1} parent=11 // pred_fallthru
          _
        // Predicated region
        $region17: #{embedding_classifier.1} parent=11 // pred_check
          %p191 = pneg %p84
        $region18: #{embedding_classifier.1} parent=11 // pred_check_branch
          %193 = sbr.rel (%p191) target = $region20
        $region19: #{embedding_classifier.1} parent=11 // pred_region
          _
        $region20: #{embedding_classifier.1} parent=11 // pred_fallthru
          _
        // Predicated region
        $region21: #{embedding_classifier.1} parent=11 // pred_check
          %p194 = pneg %p105
        $region22: #{embedding_classifier.1} parent=11 // pred_check_branch
          %196 = sbr.rel (%p194) target = $region24
        $region23: #{embedding_classifier.1} parent=11 // pred_region
          _
        $region24: #{embedding_classifier.1} parent=11 // pred_fallthru
          _
        // Predicated region
        $region25: #{embedding_classifier.1} parent=11 // pred_check
          %p197 = pneg %p126
        $region26: #{embedding_classifier.1} parent=11 // pred_check_branch
          %199 = sbr.rel (%p197) target = $region28
        $region27: #{embedding_classifier.1} parent=11 // pred_region
          _
        $region28: #{embedding_classifier.1} parent=11 // pred_fallthru
          _
        // Predicated region
        $region29: #{embedding_classifier.1} parent=11 // pred_check
          %p200 = pneg %p147
        $region30: #{embedding_classifier.1} parent=11 // pred_check_branch
          %202 = sbr.rel (%p200) target = $region32
        $region31: #{embedding_classifier.1} parent=11 // pred_region
          _
        $region32: #{embedding_classifier.1} parent=11 // pred_fallthru
          _
      $region12: #{embedding_classifier.1} parent=5 // pred_fallthru
        _
      %p203 = scmp.lt.s32.totalorder %s16, 2
      // Predicated region
      $region33: #{embedding_classifier.1} parent=5 // pred_check
        %p204 = pneg %p203
      $region34: #{embedding_classifier.1} parent=5 // pred_check_branch
        %206 = sbr.rel (%p204) target = $region36
      $region35: #{embedding_classifier.1} parent=5 // pred_region
        // Predicated region
        $region37: #{embedding_classifier.1} parent=35 // pred_check
          %p207 = pneg %p57
        $region38: #{embedding_classifier.1} parent=35 // pred_check_branch
          %209 = sbr.rel (%p207) target = $region40
        $region39: #{embedding_classifier.1} parent=35 // pred_region
          %s210 = smul.u32 2, %s16
          %p211 = scmp.lt.s32.totalorder %s210, 3
          %s212 = scalar_select %p211, %s210, 3
          %s213 = smul.addr %s212, 8
          %s214 = scalar_lea.vmem %s1, %s213
          %s215 = smul.u32 2, %s16
        $region40: #{embedding_classifier.1} parent=35 // pred_fallthru
          _
      $region36: #{embedding_classifier.1} parent=5 // pred_fallthru
        _
      %p216 = scmp.le.s32.totalorder 1, %s16
      %p217 = scmp.lt.s32.totalorder %s16, 3
      %p218 = pnand %p216, %p217
      %p219 = pneg %p218
      // Predicated region
      $region41: #{embedding_classifier.1} parent=5 // pred_check
        _
      $region42: #{embedding_classifier.1} parent=5 // pred_check_branch
        %221 = sbr.rel (%p218) target = $region44
      $region43: #{embedding_classifier.1} parent=5 // pred_region
        %s222 = ssub.s32 %s16, 1
        %p223 = pneg %p37
        %p224 = pneg %p34
        %s225 = smul.u32 2, %s21
        %p226 = scmp.lt.s32.totalorder %s225, 3
        %s227 = scalar_select %p226, %s225, 3
        %s228 = smul.addr %s227, 8
        %s229 = scalar_lea.vmem %s1, %s228
        %p230 = pneg %p63
        %p231 = pneg %p60
        %p232 = pneg %p84
        %p233 = pneg %p81
        %p234 = pneg %p105
        %p235 = pneg %p102
        %p236 = pneg %p126
        %p237 = pneg %p123
        %p238 = pneg %p147
        %p239 = pneg %p144
        %p240 = pneg %p173
        %p241 = pneg %p170
        %s242 = sand.u32 %s160, 1
        %s243 = scalar_lea.sflag [#allocation4], %s242
        %s244 = sand.u32 %s160, 1
        %s245 = smul.addr %s244, 16
        %s246 = scalar_lea.vmem [#allocation3], %s245
        %s247 = smul.u32 2, %s21
        %p248 = scmp.lt.s32.totalorder %s247, 3
        %s249 = scalar_select %p248, %s247, 3
        %s250 = smul.addr %s249, 8
        %s251 = scalar_lea.vmem %s1, %s250
        %s252 = smul.u32 2, %s21
        %s253 = smul.u32 2, %s21
        %s254 = sld [smem:[#allocation2]]
        %v255 = vld [vmem:[%s251] sm:$0xff]
        %v256 = vld [vmem:[%s251 + $0x8] sm:$0xff]
        %v257 = vld [vmem:[%s2] sm:$0xff]
        %v258 = vld [vmem:[%s2 + $0x8] sm:$0xff]
        %v259 = vld [vmem:[%s2 + $0x10] sm:$0xff]
        %v260 = vld [vmem:[%s2 + $0x18] sm:$0xff]
        %v261 = vld [vmem:[%s2 + $0x20] sm:$0xff]
        %v262 = vld [vmem:[%s2 + $0x28] sm:$0xff]
        %v263 = vld [vmem:[%s2 + $0x30] sm:$0xff]
        %v264 = vld [vmem:[%s2 + $0x38] sm:$0xff]
        %v265 = vld [vmem:[%s2 + $0x40] sm:$0xff]
        %v266 = vld [vmem:[%s2 + $0x48] sm:$0xff]
        %v267 = vld [vmem:[%s2 + $0x50] sm:$0xff]
        %v268 = vld [vmem:[%s2 + $0x58] sm:$0xff]
        %v269 = vld [vmem:[%s2 + $0x60] sm:$0xff]
        %v270 = vld [vmem:[%s2 + $0x68] sm:$0xff]
        %v271 = vld [vmem:[%s2 + $0x70] sm:$0xff]
        %v272 = vld [vmem:[%s2 + $0x78] sm:$0xff]
        %v273 = vld [vmem:[%s3] sm:$0x1]
        %v275 = vlaneseq
        %v276 = vshrl.u32 %v275, 7
        %v277 = vsub.s32 0, %v276
        %v278 = vrot.slane %v273, %v277
        %280 = vmatprep.subr.mxu0 0.0
        %281 = vmatpush1.msra.mxu0 %v257
        %282 = vmatprep.subr.mxu0 0.0
        %283 = vmatpush1.msra.mxu0 %v258
        %284 = vmatprep.subr.mxu0 0.0
        %285 = vmatpush1.msra.mxu0 %v259
        %286 = vmatprep.subr.mxu0 0.0
        %287 = vmatpush1.msra.mxu0 %v260
        %288 = vmatprep.subr.mxu0 0.0
        %289 = vmatpush1.msra.mxu0 %v261
        %290 = vmatprep.subr.mxu0 0.0
        %291 = vmatpush1.msra.mxu0 %v262
        %292 = vmatprep.subr.mxu0 0.0
        %293 = vmatpush1.msra.mxu0 %v263
        %294 = vmatprep.subr.mxu0 0.0
        %295 = vmatpush1.msra.mxu0 %v264
        %296 = vmatprep.subr.mxu0 0.0
        %297 = vmatpush1.msra.mxu0 %v265
        %298 = vmatprep.subr.mxu0 0.0
        %299 = vmatpush1.msra.mxu0 %v266
        %300 = vmatprep.subr.mxu0 0.0
        %301 = vmatpush1.msra.mxu0 %v267
        %302 = vmatprep.subr.mxu0 0.0
        %303 = vmatpush1.msra.mxu0 %v268
        %304 = vmatprep.subr.mxu0 0.0
        %305 = vmatpush1.msra.mxu0 %v269
        %306 = vmatprep.subr.mxu0 0.0
        %307 = vmatpush1.msra.mxu0 %v270
        %308 = vmatprep.subr.mxu0 0.0
        %309 = vmatpush1.msra.mxu0 %v271
        %310 = vmatprep.subr.mxu0 0.0
        %311 = vmatpush1.msra.mxu0 %v272
        %312 = vmatprep.subr.mxu0 0.0
        %313 = vmatpush1.msra.mxu0 0.0
        %314 = vmatprep.subr.mxu0 0.0
        %315 = vmatpush1.msra.mxu0 0.0
        %316 = vmatprep.subr.mxu0 0.0
        %317 = vmatpush1.msra.mxu0 0.0
        %318 = vmatprep.subr.mxu0 0.0
        %319 = vmatpush1.msra.mxu0 0.0
        %320 = vmatprep.subr.mxu0 0.0
        %321 = vmatpush1.msra.mxu0 0.0
        %322 = vmatprep.subr.mxu0 0.0
        %323 = vmatpush1.msra.mxu0 0.0
        %324 = vmatprep.subr.mxu0 0.0
        %325 = vmatpush1.msra.mxu0 0.0
        %326 = vmatprep.subr.mxu0 0.0
        %327 = vmatpush1.msra.mxu0 0.0
        %328 = vmatprep.subr.mxu0 0.0
        %329 = vmatpush1.msra.mxu0 0.0
        %330 = vmatprep.subr.mxu0 0.0
        %331 = vmatpush1.msra.mxu0 0.0
        %332 = vmatprep.subr.mxu0 0.0
        %333 = vmatpush1.msra.mxu0 0.0
        %334 = vmatprep.subr.mxu0 0.0
        %335 = vmatpush1.msra.mxu0 0.0
        %336 = vmatprep.subr.mxu0 0.0
        %337 = vmatpush1.msra.mxu0 0.0
        %338 = vmatprep.subr.mxu0 0.0
        %339 = vmatpush1.msra.mxu0 0.0
        %340 = vmatprep.subr.mxu0 0.0
        %341 = vmatpush1.msra.mxu0 0.0
        %342 = vmatprep.subr.mxu0 0.0
        %343 = vmatpush1.msra.mxu0 0.0
        %344 = vmatprep.mubr.f32.mxu0 0.0
        %345 = vmatmul.mubr.f32.gmra.mrb[0].mxu0 %v255
        %v346 = vpop.f32.mrb[0].mxu0
        %v347 = vadd.f32 %v278, %v346
        %v348 = vpop.f32.mrb[0].mxu0
        %349 = vmatprep.mubr.f32.mxu0 0.0
        %350 = vmatmul.mubr.f32.gmra.mrb[0].mxu0 %v256
        %v351 = vpop.f32.mrb[0].mxu0
        %v352 = vadd.f32 %v278, %v351
        %v353 = vpop.f32.mrb[0].mxu0
        %354 = vdwg.mxu0
        %v355 = vmul.f32 %v347, %v347
        %v356 = vmul.f32 %v352, %v352
        %357 = vadd.xlane.f32.xlu0 %v355
        %v358 = vpop.xlane.xlu0 %357
        %359 = vadd.xlane.f32.xlu0 %v356
        %v360 = vpop.xlane.xlu0 %359
        %v361 = vld [vmem:[%s4] sm:$0xff]
        %v362 = vld [vmem:[%s4 + $0x8] sm:$0xff]
        %v363 = vld [vmem:[%s4 + $0x10] sm:$0xff]
        %v364 = vld [vmem:[%s4 + $0x18] sm:$0xff]
        %v365 = vld [vmem:[%s4 + $0x20] sm:$0xff]
        %v366 = vld [vmem:[%s4 + $0x28] sm:$0xff]
        %v367 = vld [vmem:[%s4 + $0x30] sm:$0xff]
        %v368 = vld [vmem:[%s4 + $0x38] sm:$0xff]
        %v369 = vld [vmem:[%s4 + $0x40] sm:$0xff]
        %v370 = vld [vmem:[%s4 + $0x48] sm:$0xff]
        %v371 = vld [vmem:[%s4 + $0x50] sm:$0xff]
        %v372 = vld [vmem:[%s4 + $0x58] sm:$0xff]
        %v373 = vld [vmem:[%s4 + $0x60] sm:$0xff]
        %v374 = vld [vmem:[%s4 + $0x68] sm:$0xff]
        %v375 = vld [vmem:[%s4 + $0x70] sm:$0xff]
        %v376 = vld [vmem:[%s4 + $0x78] sm:$0xff]
        %377 = vmatprep.subr.mxu0 0.0
        %378 = vmatpush1.msra.mxu0 %v361
        %379 = vmatprep.subr.mxu0 0.0
        %380 = vmatpush1.msra.mxu0 %v362
        %381 = vmatprep.subr.mxu0 0.0
        %382 = vmatpush1.msra.mxu0 %v363
        %383 = vmatprep.subr.mxu0 0.0
        %384 = vmatpush1.msra.mxu0 %v364
        %385 = vmatprep.subr.mxu0 0.0
        %386 = vmatpush1.msra.mxu0 %v365
        %387 = vmatprep.subr.mxu0 0.0
        %388 = vmatpush1.msra.mxu0 %v366
        %389 = vmatprep.subr.mxu0 0.0
        %390 = vmatpush1.msra.mxu0 %v367
        %391 = vmatprep.subr.mxu0 0.0
        %392 = vmatpush1.msra.mxu0 %v368
        %393 = vmatprep.subr.mxu0 0.0
        %394 = vmatpush1.msra.mxu0 %v369
        %395 = vmatprep.subr.mxu0 0.0
        %396 = vmatpush1.msra.mxu0 %v370
        %397 = vmatprep.subr.mxu0 0.0
        %398 = vmatpush1.msra.mxu0 %v371
        %399 = vmatprep.subr.mxu0 0.0
        %400 = vmatpush1.msra.mxu0 %v372
        %401 = vmatprep.subr.mxu0 0.0
        %402 = vmatpush1.msra.mxu0 %v373
        %403 = vmatprep.subr.mxu0 0.0
        %404 = vmatpush1.msra.mxu0 %v374
        %405 = vmatprep.subr.mxu0 0.0
        %406 = vmatpush1.msra.mxu0 %v375
        %407 = vmatprep.subr.mxu0 0.0
        %408 = vmatpush1.msra.mxu0 %v376
        %409 = vmatprep.subr.mxu0 0.0
        %410 = vmatpush1.msra.mxu0 0.0
        %411 = vmatprep.subr.mxu0 0.0
        %412 = vmatpush1.msra.mxu0 0.0
        %413 = vmatprep.subr.mxu0 0.0
        %414 = vmatpush1.msra.mxu0 0.0
        %415 = vmatprep.subr.mxu0 0.0
        %416 = vmatpush1.msra.mxu0 0.0
        %417 = vmatprep.subr.mxu0 0.0
        %418 = vmatpush1.msra.mxu0 0.0
        %419 = vmatprep.subr.mxu0 0.0
        %420 = vmatpush1.msra.mxu0 0.0
        %421 = vmatprep.subr.mxu0 0.0
        %422 = vmatpush1.msra.mxu0 0.0
        %423 = vmatprep.subr.mxu0 0.0
        %424 = vmatpush1.msra.mxu0 0.0
        %425 = vmatprep.subr.mxu0 0.0
        %426 = vmatpush1.msra.mxu0 0.0
        %427 = vmatprep.subr.mxu0 0.0
        %428 = vmatpush1.msra.mxu0 0.0
        %429 = vmatprep.subr.mxu0 0.0
        %430 = vmatpush1.msra.mxu0 0.0
        %431 = vmatprep.subr.mxu0 0.0
        %432 = vmatpush1.msra.mxu0 0.0
        %433 = vmatprep.subr.mxu0 0.0
        %434 = vmatpush1.msra.mxu0 0.0
        %435 = vmatprep.subr.mxu0 0.0
        %436 = vmatpush1.msra.mxu0 0.0
        %437 = vmatprep.subr.mxu0 0.0
        %438 = vmatpush1.msra.mxu0 0.0
        %439 = vmatprep.subr.mxu0 0.0
        %440 = vmatpush1.msra.mxu0 0.0
        %441 = vmatprep.mubr.f32.mxu0 0.0
        %442 = vmatmul.mubr.f32.gmra.mrb[0].mxu0 %v347
        %v443 = vpop.f32.mrb[0].mxu0
        %v444 = vadd.f32 0.0, %v443
        %v445 = vpop.f32.mrb[0].mxu0
        %446 = vmatprep.mubr.f32.mxu0 0.0
        %447 = vmatmul.mubr.f32.gmra.mrb[0].mxu0 %v352
        %v448 = vpop.f32.mrb[0].mxu0
        %v449 = vadd.f32 0.0, %v448
        %v450 = vpop.f32.mrb[0].mxu0
        %451 = vdwg.mxu0
        %v452 = vld [vmem:[%s5] sm:$0x1]
        %v454 = vlaneseq
        %v455 = vshrl.u32 %v454, 7
        %v456 = vsub.s32 0, %v455
        %v457 = vrot.slane %v452, %v456
        %v459 = vadd.f32 %v358, %v457
        %v460 = vadd.f32 %v360, %v457
        %v461 = vadd.f32 %v459, %v444
        %v462 = vadd.f32 %v460, %v449
        %v463 = vmax.f32 %v461, 0.0
        %v464 = vmax.f32 %v462, 0.0
        %v465 = vrsqrt.pop %v463
        %v466 = vmul.f32 %v463, %v465
        %vm467 = vcmp.eq.f32.partialorder %v463, inf
        %v468 = vsel %vm467, %v463, %v466
        %vm469 = vcmp.eq.f32.partialorder %v463, 0.0
        %v470 = vand.u32 %v463, 2147483648
        %v471 = vsel %vm469, %v470, %v468
        %v472 = vrsqrt.pop %v464
        %v473 = vmul.f32 %v464, %v472
        %vm474 = vcmp.eq.f32.partialorder %v464, inf
        %v475 = vsel %vm474, %v464, %v473
        %vm476 = vcmp.eq.f32.partialorder %v464, 0.0
        %v477 = vand.u32 %v464, 2147483648
        %v478 = vsel %vm476, %v477, %v475
        %v479 = vstv %s254
        %v480 = vmul.f32 %v471, %v479
        %v481 = vmul.f32 %v478, %v479
        %482 = vst [vmem:[%s246] sm:$0xff] %v480
        %483 = vst [vmem:[%s246 + $0x8] sm:$0xff] %v481
        %s484 = sand.u32 %s160, 1
        %s485 = scalar_lea.sflag [#allocation4], %s484
        %s486 = sand.u32 %s160, 1
        %s487 = smul.addr %s486, 16
        %s488 = scalar_lea.vmem [#allocation3], %s487
        // Predicated region
        $region45: #{embedding_classifier.1} parent=43 // pred_check
          %p489 = pneg %p170
        $region46: #{embedding_classifier.1} parent=43 // pred_check_branch
          %491 = sbr.rel (%p489) target = $region48
        $region47: #{embedding_classifier.1} parent=43 // pred_region
          %s492 = smul.u32 2, %s21
          %s494 = ssub.s32 256, 256
          %495 = vsyncadd %s485, %s494
          %s496 = smul.addr %s492, 128
          %s497 = scalar_lea.hbm %s6, %s496
          %s498 = sshll.u32 %s488, 4
          %s499 = int_to_ptr.vmem [resolvable:$true] %s498
          %504 = dma.vmem_to_hbm [thread:$0]  %s499, 256, %s497, %s485, 128, 128, 8
        $region48: #{embedding_classifier.1} parent=43 // pred_fallthru
          _
      $region44: #{embedding_classifier.1} parent=5 // pred_fallthru
        _
      %p505 = scmp.le.s32.totalorder 2, %s16
      // Predicated region
      $region49: #{embedding_classifier.1} parent=5 // pred_check
        %p506 = pneg %p505
      $region50: #{embedding_classifier.1} parent=5 // pred_check_branch
        %508 = sbr.rel (%p506) target = $region52
      $region51: #{embedding_classifier.1} parent=5 // pred_region
        %s509 = ssub.s32 %s16, 2
        // Predicated region
        $region53: #{embedding_classifier.1} parent=51 // pred_check
          %p510 = pneg %p176
        $region54: #{embedding_classifier.1} parent=51 // pred_check_branch
          %512 = sbr.rel (%p510) target = $region56
        $region55: #{embedding_classifier.1} parent=51 // pred_region
          %s513 = sand.u32 %s161, 1
          %s514 = scalar_lea.sflag [#allocation4], %s513
          %s515 = sand.u32 %s161, 1
          %s516 = smul.addr %s515, 16
          %s517 = scalar_lea.vmem [#allocation3], %s516
          %518 = dma.done %s514, 256
        $region56: #{embedding_classifier.1} parent=51 // pred_fallthru
          _
      $region52: #{embedding_classifier.1} parent=5 // pred_fallthru
        _
    $region6: #{embedding_classifier.1} parent=1 // loop_footer
      %s20 = sadd.s32 1, %s16
    $region7: #{embedding_classifier.1} parent=1 // loop_footer_branch
      %15 = sbr.rel target = $region3
    $region8: #{embedding_classifier.1} parent=1 // loop_exit
      _
    %519 = vsyncpa [#allocation4], 1
    %s520 = scalar_lea.sflag [#allocation4], 1
    %521 = vsyncpa %s520, 1

</llo_original>
